<compile_context>
chip_gen: v7x
topology: tpu7x:2x2x1
jax: 0.10.0
libtpu: 0.0.40
codegen_flags: <defaults>
</compile_context>

<pallas_src>
import functools

import jax
import jax.numpy as jnp
from jax import lax
from jax.experimental import pallas as pl
from jax.experimental.pallas import tpu as pltpu

_SUB_ROWS = 16                          # compute sub-chunk: (16, 128) pixels
_PIX_ALIGN = _SUB_ROWS * 128            # pixel axis padded to a multiple of this
_LOGITS_BLOCK_BYTES = 8 * 1024 * 1024   # per-grid-step logits DMA tile target


def _ce_kernel(logits_ref, target_ref, loss_ref, cnt_ref, *,
               num_classes, tile_rows, tiles_per_chunk, total_rows,
               ignore_index):
    """Grid = (N, pixel_chunk, tile).

    Block views:
      logits_ref: (1, C, tile_rows, 128)
      target_ref: (1, tile_rows, 128) int32
      loss_ref / cnt_ref: (1, 1, _SUB_ROWS, 128) f32 partial-sum accumulators
    """
    pc = pl.program_id(1)
    t = pl.program_id(2)

    @pl.when(t == 0)
    def _init():
        loss_ref[...] = jnp.zeros_like(loss_ref)
        cnt_ref[...] = jnp.zeros_like(cnt_ref)

    # First pixel-row (sublane) handled by this grid step, *unclamped*: for
    # duplicate / partial tiles the row mask below zeroes the contribution.
    tile_row0 = (pc * tiles_per_chunk + t) * tile_rows
    n_sub = tile_rows // _SUB_ROWS

    # Hoisted iota (don't regenerate the broadcast inside the loop).
    base_row = lax.broadcasted_iota(jnp.int32, (_SUB_ROWS, 128), 0)

    def body(j, carry):
        loss_acc, cnt_acc = carry
        r0 = pl.multiple_of(j * _SUB_ROWS, _SUB_ROWS)

        tgt = target_ref[0, pl.ds(r0, _SUB_ROWS), :]            # (16, 128) i32
        row = tile_row0 + r0 + base_row
        valid = jnp.logical_and(row < total_rows, tgt != ignore_index)

        # Pass 1: running max over classes (unrolled, element-wise only).
        rmax = logits_ref[0, 0, pl.ds(r0, _SUB_ROWS), :].astype(jnp.float32)
        for c in range(1, num_classes):
            rmax = jnp.maximum(
                rmax,
                logits_ref[0, c, pl.ds(r0, _SUB_ROWS), :].astype(jnp.float32))

        # Pass 2: exp-sum and target-logit gather via per-class select.
        esum = jnp.zeros((_SUB_ROWS, 128), jnp.float32)
        pick = jnp.zeros((_SUB_ROWS, 128), jnp.float32)
        for c in range(num_classes):
            lc = logits_ref[0, c, pl.ds(r0, _SUB_ROWS), :].astype(jnp.float32)
            esum = esum + jnp.exp(lc - rmax)
            pick = pick + jnp.where(tgt == c, lc, 0.0)

        lse = rmax + jnp.log(esum)                              # (16, 128)
        loss_acc = loss_acc + jnp.where(valid, lse - pick, 0.0)
        cnt_acc = cnt_acc + valid.astype(jnp.float32)
        return loss_acc, cnt_acc

    zeros = jnp.zeros((_SUB_ROWS, 128), jnp.float32)
    loss_acc, cnt_acc = lax.fori_loop(0, n_sub, body, (zeros, zeros))

    loss_ref[0, 0, :, :] = loss_ref[0, 0, :, :] + loss_acc
    cnt_ref[0, 0, :, :] = cnt_ref[0, 0, :, :] + cnt_acc


def cross_entropy_loss(prediction: jax.Array, target: jax.Array,
                       reduction: str = "mean",
                       ignore_index: int = -100) -> jax.Array:
    """prediction: (N, C, H, W) float logits, target: (N, H, W) int class ids."""
    if reduction not in ("mean", "sum"):
        # TODO(synk): reduction='none' (per-pixel loss map) not implemented.
        raise NotImplementedError(f"reduction={reduction!r} not supported")

    N, C, H, W = prediction.shape
    HW = H * W

    # Fold the pixel axis onto (sublane, lane) without touching the class axis
    # (keeps native NCHW layout; the reshapes are free when HW is already a
    # multiple of _PIX_ALIGN = 2048, which holds for typical seg resolutions).
    hw_pad = pl.cdiv(HW, _PIX_ALIGN) * _PIX_ALIGN
    logits = prediction.reshape(N, C, HW)
    tgt = target.reshape(N, HW).astype(jnp.int32)
    if hw_pad != HW:
        logits = jnp.pad(logits, ((0, 0), (0, 0), (0, hw_pad - HW)))
        tgt = jnp.pad(tgt, ((0, 0), (0, hw_pad - HW)),
                      constant_values=ignore_index)
    S = hw_pad // 128                    # pixel rows, multiple of _SUB_ROWS
    logits = logits.reshape(N, C, S, 128)
    tgt = tgt.reshape(N, S, 128)

    # Tile sizing: ~8 MiB of logits per grid step, rows a multiple of
    # _SUB_ROWS, never exceeding S.  VMEM use: 2x logits tile + 2x target tile
    # + tiny accumulators -> comfortably under every generation's budget.
    bytes_per_row = C * 128 * logits.dtype.itemsize
    tile_rows = max(_SUB_ROWS,
                    (_LOGITS_BLOCK_BYTES // bytes_per_row)
                    // _SUB_ROWS * _SUB_ROWS)
    tile_rows = min(tile_rows, S)
    n_tiles = pl.cdiv(S, tile_rows)
    n_pchunks = 2 if n_tiles >= 2 else 1      # v7x: feed both TensorCores
    tiles_per_chunk = pl.cdiv(n_tiles, n_pchunks)

    def row_block(pcg, tg):
        # Clamp so the DMA never indexes past the last block; duplicated /
        # padded tiles are masked to zero inside the kernel.
        return jnp.minimum(pcg * tiles_per_chunk + tg, n_tiles - 1)

    kernel = functools.partial(
        _ce_kernel, num_classes=C, tile_rows=tile_rows,
        tiles_per_chunk=tiles_per_chunk, total_rows=S,
        ignore_index=ignore_index)

    M = N * HW
    cost = pl.CostEstimate(
        flops=int(M * (6 * C + 8)),
        transcendentals=int(M * (C + 1)),
        bytes_accessed=int(logits.size * logits.dtype.itemsize
                           + tgt.size * 4
                           + 2 * N * n_pchunks * _SUB_ROWS * 128 * 4))

    loss_parts, cnt_parts = pl.pallas_call(
        kernel,
        out_shape=(
            jax.ShapeDtypeStruct((N, n_pchunks, _SUB_ROWS, 128), jnp.float32),
            jax.ShapeDtypeStruct((N, n_pchunks, _SUB_ROWS, 128), jnp.float32),
        ),
        grid_spec=pltpu.PrefetchScalarGridSpec(
            num_scalar_prefetch=0,
            grid=(N, n_pchunks, tiles_per_chunk),
            in_specs=[
                pl.BlockSpec((1, C, tile_rows, 128),
                             lambda n, pc, t: (n, 0, row_block(pc, t), 0)),
                pl.BlockSpec((1, tile_rows, 128),
                             lambda n, pc, t: (n, row_block(pc, t), 0)),
            ],
            out_specs=(
                pl.BlockSpec((1, 1, _SUB_ROWS, 128),
                             lambda n, pc, t: (n, pc, 0, 0)),
                pl.BlockSpec((1, 1, _SUB_ROWS, 128),
                             lambda n, pc, t: (n, pc, 0, 0)),
            ),
        ),
        compiler_params=pltpu.CompilerParams(
            dimension_semantics=("parallel", "parallel", "arbitrary"),
            vmem_limit_bytes=48 * 1024 * 1024),
        cost_estimate=cost,
    )(logits, tgt)

    total_loss = jnp.sum(loss_parts)
    total_cnt = jnp.sum(cnt_parts)
    if reduction == "mean":
        return total_loss / total_cnt
    return total_loss


class CrossEntropyLoss:
    """Thin parity wrapper mirroring the PyTorch module."""

    def __init__(self, reduction: str = "mean"):
        self.reduction = reduction

    def __call__(self, prediction: jax.Array, target: jax.Array) -> jax.Array:
        return cross_entropy_loss(prediction, target, reduction=self.reduction)


if __name__ == "__main__":
    key = jax.random.PRNGKey(0)
    k_pred, k_tgt = jax.random.split(key)

    N, C, H, W = 2, 4, 16, 16
    prediction = jax.random.normal(k_pred, (N, C, H, W), dtype=jnp.float32)
    target = jax.random.randint(k_tgt, (N, H, W), 0, C, dtype=jnp.int32)

    loss = CrossEntropyLoss(reduction="mean")(prediction, target)
    jax.block_until_ready(loss)

    # Pure-JAX reference check (same semantics as nn.CrossEntropyLoss(mean)).
    logits2d = jnp.transpose(prediction, (0, 2, 3, 1)).reshape(-1, C)
    tflat = target.reshape(-1)
    ref = jnp.mean(jax.nn.logsumexp(logits2d, axis=-1)
                   - jnp.take_along_axis(logits2d, tflat[:, None], axis=-1)[:, 0])
    assert jnp.allclose(loss, ref, rtol=1e-5, atol=1e-5), (loss, ref)

    print("KERNEL_OK")
</pallas_src>

<mosaic_0001>
module attributes {stable_mosaic.version = 11 : i64} {
  func.func @_ce_kernel(%arg0: i32, %arg1: i32, %arg2: i32, %arg3: memref<1x4x16x128xf32, #tpu.memory_space<vmem>>, %arg4: memref<1x16x128xi32, #tpu.memory_space<vmem>>, %arg5: memref<1x1x16x128xf32, #tpu.memory_space<vmem>>, %arg6: memref<1x1x16x128xf32, #tpu.memory_space<vmem>>) attributes {dimension_semantics = [#tpu.dimension_semantics<parallel>, #tpu.dimension_semantics<parallel>, #tpu.dimension_semantics<arbitrary>], iteration_bounds = array<i64: 2, 1, 1>, scalar_prefetch = 0 : i64, scratch_operands = 0 : i64, tpu.core_type = #tpu.core_type<tc>, window_params = [{transform_indices = @transform_0, window_bounds = array<i64: 1, 4, 16, 128>}, {transform_indices = @transform_1, window_bounds = array<i64: 1, 16, 128>}, {transform_indices = @transform_2, window_bounds = array<i64: 1, 1, 16, 128>}, {transform_indices = @transform_3, window_bounds = array<i64: 1, 1, 16, 128>}]} {
    %c0_i32 = arith.constant 0 : i32
    %0 = arith.cmpi eq, %arg2, %c0_i32 : i32
    %1 = arith.extui %0 : i1 to i32
    %c0_i32_0 = arith.constant 0 : i32
    %2 = arith.cmpi ne, %1, %c0_i32_0 : i32
    scf.if %2 {
      %cst_52 = arith.constant 0.000000e+00 : f32
      %103 = vector.broadcast %cst_52 : f32 to vector<1x1x16x128xf32>
      %c0_53 = arith.constant 0 : index
      %c0_54 = arith.constant 0 : index
      %c0_55 = arith.constant 0 : index
      %c0_56 = arith.constant 0 : index
      %104 = vector.load %arg5[%c0_53, %c0_54, %c0_55, %c0_56] : memref<1x1x16x128xf32, #tpu.memory_space<vmem>>, vector<1x1x16x128xf32>
      tpu.vector_store %arg5[%c0_53, %c0_54, %c0_55, %c0_56], %103 {strides = array<i32>} : memref<1x1x16x128xf32, #tpu.memory_space<vmem>>, vector<1x1x16x128xf32>,
      %cst_57 = arith.constant 0.000000e+00 : f32
      %105 = vector.broadcast %cst_57 : f32 to vector<1x1x16x128xf32>
      %c0_58 = arith.constant 0 : index
      %c0_59 = arith.constant 0 : index
      %c0_60 = arith.constant 0 : index
      %c0_61 = arith.constant 0 : index
      %106 = vector.load %arg6[%c0_58, %c0_59, %c0_60, %c0_61] : memref<1x1x16x128xf32, #tpu.memory_space<vmem>>, vector<1x1x16x128xf32>
      tpu.vector_store %arg6[%c0_58, %c0_59, %c0_60, %c0_61], %105 {strides = array<i32>} : memref<1x1x16x128xf32, #tpu.memory_space<vmem>>, vector<1x1x16x128xf32>,
    } else {
    }
    %c1_i32 = arith.constant 1 : i32
    %3 = arith.muli %arg1, %c1_i32 : i32
    %4 = arith.addi %3, %arg2 : i32
    %c16_i32 = arith.constant 16 : i32
    %5 = arith.muli %4, %c16_i32 : i32
    %6 = tpu.iota {dimensions = array<i32: 0>} : vector<16x128xi32>
    %cst = arith.constant 0.000000e+00 : f32
    %7 = vector.broadcast %cst : f32 to vector<16x128xf32>
    %c0_i32_1 = arith.constant 0 : i32
    %c16_i32_2 = arith.constant 16 : i32
    %8 = arith.muli %c0_i32_1, %c16_i32_2 : i32
    %9 = tpu.assume_multiple %8, 16 : i32
    %c0 = arith.constant 0 : index
    %10 = arith.index_cast %9 : i32 to index
    %c0_3 = arith.constant 0 : index
    %11 = vector.load %arg4[%c0, %10, %c0_3] : memref<1x16x128xi32, #tpu.memory_space<vmem>>, vector<1x16x128xi32>
    %12 = vector.shape_cast %11 : vector<1x16x128xi32> to vector<16x128xi32>
    %13 = arith.addi %5, %9 : i32
    %14 = vector.broadcast %13 : i32 to vector<16x128xi32>
    %15 = arith.addi %14, %6 : vector<16x128xi32>
    %c16_i32_4 = arith.constant 16 : i32
    %16 = vector.broadcast %c16_i32_4 : i32 to vector<16x128xi32>
    %17 = arith.cmpi slt, %15, %16 : vector<16x128xi32>
    %c-100_i32 = arith.constant -100 : i32
    %18 = vector.broadcast %c-100_i32 : i32 to vector<16x128xi32>
    %19 = arith.cmpi ne, %12, %18 : vector<16x128xi32>
    %20 = arith.andi %17, %19 : vector<16x128xi1>
    %c0_5 = arith.constant 0 : index
    %c0_6 = arith.constant 0 : index
    %21 = arith.index_cast %9 : i32 to index
    %c0_7 = arith.constant 0 : index
    %22 = vector.load %arg3[%c0_5, %c0_6, %21, %c0_7] : memref<1x4x16x128xf32, #tpu.memory_space<vmem>>, vector<1x1x16x128xf32>
    %23 = vector.shape_cast %22 : vector<1x1x16x128xf32> to vector<16x128xf32>
    %c0_8 = arith.constant 0 : index
    %c1 = arith.constant 1 : index
    %24 = arith.index_cast %9 : i32 to index
    %c0_9 = arith.constant 0 : index
    %25 = vector.load %arg3[%c0_8, %c1, %24, %c0_9] : memref<1x4x16x128xf32, #tpu.memory_space<vmem>>, vector<1x1x16x128xf32>
    %26 = vector.shape_cast %25 : vector<1x1x16x128xf32> to vector<16x128xf32>
    %27 = arith.maximumf %23, %26 : vector<16x128xf32>
    %c0_10 = arith.constant 0 : index
    %c2 = arith.constant 2 : index
    %28 = arith.index_cast %9 : i32 to index
    %c0_11 = arith.constant 0 : index
    %29 = vector.load %arg3[%c0_10, %c2, %28, %c0_11] : memref<1x4x16x128xf32, #tpu.memory_space<vmem>>, vector<1x1x16x128xf32>
    %30 = vector.shape_cast %29 : vector<1x1x16x128xf32> to vector<16x128xf32>
    %31 = arith.maximumf %27, %30 : vector<16x128xf32>
    %c0_12 = arith.constant 0 : index
    %c3 = arith.constant 3 : index
    %32 = arith.index_cast %9 : i32 to index
    %c0_13 = arith.constant 0 : index
    %33 = vector.load %arg3[%c0_12, %c3, %32, %c0_13] : memref<1x4x16x128xf32, #tpu.memory_space<vmem>>, vector<1x1x16x128xf32>
    %34 = vector.shape_cast %33 : vector<1x1x16x128xf32> to vector<16x128xf32>
    %35 = arith.maximumf %31, %34 : vector<16x128xf32>
    %cst_14 = arith.constant 0.000000e+00 : f32
    %36 = vector.broadcast %cst_14 : f32 to vector<16x128xf32>
    %cst_15 = arith.constant 0.000000e+00 : f32
    %37 = vector.broadcast %cst_15 : f32 to vector<16x128xf32>
    %c0_16 = arith.constant 0 : index
    %c0_17 = arith.constant 0 : index
    %38 = arith.index_cast %9 : i32 to index
    %c0_18 = arith.constant 0 : index
    %39 = vector.load %arg3[%c0_16, %c0_17, %38, %c0_18] : memref<1x4x16x128xf32, #tpu.memory_space<vmem>>, vector<1x1x16x128xf32>
    %40 = vector.shape_cast %39 : vector<1x1x16x128xf32> to vector<16x128xf32>
    %41 = arith.subf %40, %35 : vector<16x128xf32>
    %42 = math.exp %41 : vector<16x128xf32>
    %43 = arith.addf %36, %42 : vector<16x128xf32>
    %c0_i32_19 = arith.constant 0 : i32
    %44 = vector.broadcast %c0_i32_19 : i32 to vector<16x128xi32>
    %45 = arith.cmpi eq, %12, %44 : vector<16x128xi32>
    %cst_20 = arith.constant 0.000000e+00 : f32
    %46 = vector.broadcast %cst_20 : f32 to vector<16x128xf32>
    %47 = arith.select %45, %40, %46 : vector<16x128xi1>, vector<16x128xf32>
    %48 = arith.addf %37, %47 : vector<16x128xf32>
    %c0_21 = arith.constant 0 : index
    %c1_22 = arith.constant 1 : index
    %49 = arith.index_cast %9 : i32 to index
    %c0_23 = arith.constant 0 : index
    %50 = vector.load %arg3[%c0_21, %c1_22, %49, %c0_23] : memref<1x4x16x128xf32, #tpu.memory_space<vmem>>, vector<1x1x16x128xf32>
    %51 = vector.shape_cast %50 : vector<1x1x16x128xf32> to vector<16x128xf32>
    %52 = arith.subf %51, %35 : vector<16x128xf32>
    %53 = math.exp %52 : vector<16x128xf32>
    %54 = arith.addf %43, %53 : vector<16x128xf32>
    %c1_i32_24 = arith.constant 1 : i32
    %55 = vector.broadcast %c1_i32_24 : i32 to vector<16x128xi32>
    %56 = arith.cmpi eq, %12, %55 : vector<16x128xi32>
    %cst_25 = arith.constant 0.000000e+00 : f32
    %57 = vector.broadcast %cst_25 : f32 to vector<16x128xf32>
    %58 = arith.select %56, %51, %57 : vector<16x128xi1>, vector<16x128xf32>
    %59 = arith.addf %48, %58 : vector<16x128xf32>
    %c0_26 = arith.constant 0 : index
    %c2_27 = arith.constant 2 : index
    %60 = arith.index_cast %9 : i32 to index
    %c0_28 = arith.constant 0 : index
    %61 = vector.load %arg3[%c0_26, %c2_27, %60, %c0_28] : memref<1x4x16x128xf32, #tpu.memory_space<vmem>>, vector<1x1x16x128xf32>
    %62 = vector.shape_cast %61 : vector<1x1x16x128xf32> to vector<16x128xf32>
    %63 = arith.subf %62, %35 : vector<16x128xf32>
    %64 = math.exp %63 : vector<16x128xf32>
    %65 = arith.addf %54, %64 : vector<16x128xf32>
    %c2_i32 = arith.constant 2 : i32
    %66 = vector.broadcast %c2_i32 : i32 to vector<16x128xi32>
    %67 = arith.cmpi eq, %12, %66 : vector<16x128xi32>
    %cst_29 = arith.constant 0.000000e+00 : f32
    %68 = vector.broadcast %cst_29 : f32 to vector<16x128xf32>
    %69 = arith.select %67, %62, %68 : vector<16x128xi1>, vector<16x128xf32>
    %70 = arith.addf %59, %69 : vector<16x128xf32>
    %c0_30 = arith.constant 0 : index
    %c3_31 = arith.constant 3 : index
    %71 = arith.index_cast %9 : i32 to index
    %c0_32 = arith.constant 0 : index
    %72 = vector.load %arg3[%c0_30, %c3_31, %71, %c0_32] : memref<1x4x16x128xf32, #tpu.memory_space<vmem>>, vector<1x1x16x128xf32>
    %73 = vector.shape_cast %72 : vector<1x1x16x128xf32> to vector<16x128xf32>
    %74 = arith.subf %73, %35 : vector<16x128xf32>
    %75 = math.exp %74 : vector<16x128xf32>
    %76 = arith.addf %65, %75 : vector<16x128xf32>
    %c3_i32 = arith.constant 3 : i32
    %77 = vector.broadcast %c3_i32 : i32 to vector<16x128xi32>
    %78 = arith.cmpi eq, %12, %77 : vector<16x128xi32>
    %cst_33 = arith.constant 0.000000e+00 : f32
    %79 = vector.broadcast %cst_33 : f32 to vector<16x128xf32>
    %80 = arith.select %78, %73, %79 : vector<16x128xi1>, vector<16x128xf32>
    %81 = arith.addf %70, %80 : vector<16x128xf32>
    %82 = math.log %76 : vector<16x128xf32>
    %83 = arith.addf %35, %82 : vector<16x128xf32>
    %84 = arith.subf %83, %81 : vector<16x128xf32>
    %cst_34 = arith.constant 0.000000e+00 : f32
    %85 = vector.broadcast %cst_34 : f32 to vector<16x128xf32>
    %86 = arith.select %20, %84, %85 : vector<16x128xi1>, vector<16x128xf32>
    %87 = arith.addf %7, %86 : vector<16x128xf32>
    %88 = arith.extui %20 : vector<16x128xi1> to vector<16x128xi32>
    %89 = arith.sitofp %88 : vector<16x128xi32> to vector<16x128xf32>
    %90 = arith.addf %7, %89 : vector<16x128xf32>
    %c1_i32_35 = arith.constant 1 : i32
    %c0_36 = arith.constant 0 : index
    %c0_37 = arith.constant 0 : index
    %c0_38 = arith.constant 0 : index
    %c0_39 = arith.constant 0 : index
    %91 = vector.load %arg5[%c0_36, %c0_37, %c0_38, %c0_39] : memref<1x1x16x128xf32, #tpu.memory_space<vmem>>, vector<1x1x16x128xf32>
    %92 = vector.shape_cast %91 : vector<1x1x16x128xf32> to vector<16x128xf32>
    %93 = arith.addf %92, %87 : vector<16x128xf32>
    %c0_40 = arith.constant 0 : index
    %c0_41 = arith.constant 0 : index
    %c0_42 = arith.constant 0 : index
    %c0_43 = arith.constant 0 : index
    %94 = vector.load %arg5[%c0_40, %c0_41, %c0_42, %c0_43] : memref<1x1x16x128xf32, #tpu.memory_space<vmem>>, vector<1x1x16x128xf32>
    %95 = vector.shape_cast %94 : vector<1x1x16x128xf32> to vector<16x128xf32>
    %96 = vector.shape_cast %93 : vector<16x128xf32> to vector<1x1x16x128xf32>
    tpu.vector_store %arg5[%c0_40, %c0_41, %c0_42, %c0_43], %96 {strides = array<i32>} : memref<1x1x16x128xf32, #tpu.memory_space<vmem>>, vector<1x1x16x128xf32>,
    %c0_44 = arith.constant 0 : index
    %c0_45 = arith.constant 0 : index
    %c0_46 = arith.constant 0 : index
    %c0_47 = arith.constant 0 : index
    %97 = vector.load %arg6[%c0_44, %c0_45, %c0_46, %c0_47] : memref<1x1x16x128xf32, #tpu.memory_space<vmem>>, vector<1x1x16x128xf32>
    %98 = vector.shape_cast %97 : vector<1x1x16x128xf32> to vector<16x128xf32>
    %99 = arith.addf %98, %90 : vector<16x128xf32>
    %c0_48 = arith.constant 0 : index
    %c0_49 = arith.constant 0 : index
    %c0_50 = arith.constant 0 : index
    %c0_51 = arith.constant 0 : index
    %100 = vector.load %arg6[%c0_48, %c0_49, %c0_50, %c0_51] : memref<1x1x16x128xf32, #tpu.memory_space<vmem>>, vector<1x1x16x128xf32>
    %101 = vector.shape_cast %100 : vector<1x1x16x128xf32> to vector<16x128xf32>
    %102 = vector.shape_cast %99 : vector<16x128xf32> to vector<1x1x16x128xf32>
    tpu.vector_store %arg6[%c0_48, %c0_49, %c0_50, %c0_51], %102 {strides = array<i32>} : memref<1x1x16x128xf32, #tpu.memory_space<vmem>>, vector<1x1x16x128xf32>,
    return
  }
  func.func @transform_0(%arg0: i32, %arg1: i32, %arg2: i32) -> (i32, i32, i32, i32) {
    %c1_i32 = arith.constant 1 : i32
    %0 = arith.muli %arg1, %c1_i32 : i32
    %1 = arith.addi %0, %arg2 : i32
    %c0_i32 = arith.constant 0 : i32
    %2 = arith.minsi %1, %c0_i32 : i32
    %c0_i32_0 = arith.constant 0 : i32
    %c0_i32_1 = arith.constant 0 : i32
    %c0_i32_2 = arith.constant 0 : i32
    return %arg0, %c0_i32_0, %2, %c0_i32_1 : i32, i32, i32, i32
  }
  func.func @transform_1(%arg0: i32, %arg1: i32, %arg2: i32) -> (i32, i32, i32) {
    %c1_i32 = arith.constant 1 : i32
    %0 = arith.muli %arg1, %c1_i32 : i32
    %1 = arith.addi %0, %arg2 : i32
    %c0_i32 = arith.constant 0 : i32
    %2 = arith.minsi %1, %c0_i32 : i32
    %c0_i32_0 = arith.constant 0 : i32
    %c0_i32_1 = arith.constant 0 : i32
    return %arg0, %2, %c0_i32_0 : i32, i32, i32
  }
  func.func @transform_2(%arg0: i32, %arg1: i32, %arg2: i32) -> (i32, i32, i32, i32) {
    %c0_i32 = arith.constant 0 : i32
    %c0_i32_0 = arith.constant 0 : i32
    %c0_i32_1 = arith.constant 0 : i32
    return %arg0, %arg1, %c0_i32, %c0_i32_0 : i32, i32, i32, i32
  }
  func.func @transform_3(%arg0: i32, %arg1: i32, %arg2: i32) -> (i32, i32, i32, i32) {
    %c0_i32 = arith.constant 0 : i32
    %c0_i32_0 = arith.constant 0 : i32
    %c0_i32_1 = arith.constant 0 : i32
    return %arg0, %arg1, %c0_i32, %c0_i32_0 : i32, i32, i32, i32
  }
}

</mosaic_0001>

<llo_original>
// kernel: tpu_custom_call.1
$region0: #{tpu_custom_call.1}
  #allocation0 [shape = 'u32[]', space=smem, size = 0x4, offset = 0x4, fixed_abs, tag = 'smem constant byte address 0x4 - core index']
  #allocation1 [shape = 'u32[144,128]{1,0:T(1,128)}', space=vmem, size = 0x12000, scoped, tag = 'internal scratch']
  %s0 = inlined_call_operand.hbm [shape: f32[2,4,16,128], index: 0, kind: input, shape index: {}]
  %s1 = inlined_call_operand.hbm [shape: s32[2,16,128], index: 1, kind: input, shape index: {}]
  %s2 = inlined_call_operand.hbm [shape: f32[2,1,16,128], index: 2, kind: output, shape index: {0}]
  %s3 = inlined_call_operand.hbm [shape: f32[2,1,16,128], index: 3, kind: output, shape index: {1}]
  %4 = xla_tuple %s2, %s3
  %s5 = sld [smem:[#allocation0]]
  $region61: #{tpu_custom_call.1} parent=0
    _
  %s7 = ssub.s32 1, %s5
  %s8 = scalar_select 0, %s7, %s5
  $region1: #{tpu_custom_call.1} parent=0
    #allocation2 [shape = 'u8[65536]{0}', space=vmem, size = 0x10000, scoped, tag = 'input window, operand 0']
    #allocation3 [shape = 's32[2]{0}', space=sflag, size = 0x8, scoped, tag = 'scoped memory for tpu_custom_call.1']
    #allocation4 [shape = 's32[2]{0}', space=sflag, size = 0x8, scoped, tag = 'scoped memory for tpu_custom_call.1']
    #allocation5 [shape = 'u8[16384]{0}', space=vmem, size = 0x4000, scoped, tag = 'input window, operand 1']
    #allocation6 [shape = 's32[2]{0}', space=sflag, size = 0x8, scoped, tag = 'scoped memory for tpu_custom_call.1']
    #allocation7 [shape = 'u8[16384]{0}', space=vmem, size = 0x4000, scoped, tag = 'output window, operand 0']
    #allocation8 [shape = 'u8[16384]{0}', space=vmem, size = 0x4000, scoped, tag = 'output window, operand 1']
    #allocation9 [shape = 's32[2]{0}', space=sflag, size = 0x8, scoped, tag = 'scoped memory for tpu_custom_call.1']
    %9 = vsyncpa [#allocation3], 0
    %s10 = scalar_lea.sflag [#allocation3], 1
    %11 = vsyncpa %s10, 0
    %12 = vsyncpa [#allocation6], 0
    %s13 = scalar_lea.sflag [#allocation6], 1
    %14 = vsyncpa %s13, 0
    %15 = vsyncpa [#allocation4], 0
    %s16 = scalar_lea.sflag [#allocation4], 1
    %17 = vsyncpa %s16, 0
    %18 = vsyncpa [#allocation9], 0
    %s19 = scalar_lea.sflag [#allocation9], 1
    %20 = vsyncpa %s19, 0
    loop: start=0, step=1, limit=4
    $region2: #{tpu_custom_call.1} parent=1 // loop_pre_header
      _
    $region3: #{tpu_custom_call.1} parent=1 // loop_header
      %s22 = sphi 0, %s26
      %p23 = scmp.ge.s32.totalorder %s22, 4
      %s29 = sphi 0, %s48
      %s30 = sphi 0, %s44
      %s31 = sphi 0, %s40
      %s32 = sphi 0, %s29
      %s33 = sphi 0, %s30
      %s34 = sphi 0, %s31
      %s35 = sphi 0, %s32
      %s36 = sphi 0, %s33
      %s37 = sphi 0, %s34
      %s59 = sphi 0, %s61
      %s62 = sphi 0, %s59
      %s63 = sphi 0, %s62
      %s79 = sphi 0, %s63
      %s93 = sphi 0, %s95
      %s96 = sphi 0, %s93
      %s97 = sphi 0, %s96
      %s113 = sphi 0, %s97
      %s121 = sphi 0, %s123
      %s124 = sphi 0, %s121
      %s125 = sphi 0, %s124
      %s141 = sphi 0, %s125
      %s149 = sphi 0, %s151
      %s152 = sphi 0, %s149
      %s153 = sphi 0, %s152
      %s169 = sphi 0, %s153
    $region4: #{tpu_custom_call.1} parent=1 // loop_header_branch
      %25 = sbr.rel (%p23) target = $region8
    $region5: #{tpu_custom_call.1} parent=1 // loop_body
      %s27 = ssub.s32 %s22, 1
      %s28 = ssub.s32 %s22, 2
      %s38 = sadd.s32 1, %s31
      %p39 = scmp.ge.s32.totalorder %s38, 1
      %s40 = scalar_select %p39, 0, %s38
      %s41 = sadd.s32 1, %s30
      %s42 = scalar_select %p39, %s41, %s30
      %p43 = scmp.ge.s32.totalorder %s42, 1
      %s44 = scalar_select %p43, 0, %s42
      %s45 = sadd.s32 1, %s29
      %s46 = scalar_select %p43, %s45, %s29
      %p47 = scmp.ge.s32.totalorder %s46, 2
      %s48 = scalar_select %p47, 0, %s46
      %s49 = sadd.s32 %s30, %s31
      %p50 = scmp.lt.s32.totalorder %s49, 0
      %s51 = scalar_select %p50, %s49, 0
      %s52 = sadd.s32 %s44, %s40
      %p53 = scmp.lt.s32.totalorder %s52, 0
      %s54 = scalar_select %p53, %s52, 0
      %s55 = ssub.s32 %s29, %s48
      %s56 = ssub.s32 %s51, %s54
      %s57 = sor.u32 %s55, %s56
      %p58 = scmp.eq.s32.totalorder %s57, 0
      %s60 = sadd.s32 %s59, 1
      %s61 = scalar_select %p58, %s59, %s60
      %p64 = pneg %p58
      %p65 = scmp.eq.s32.totalorder %s22, 1
      %p66 = por %p64, %p65
      %p67 = scmp.ne.s32.totalorder %s59, %s62
      %p68 = scmp.eq.s32.totalorder %s22, 0
      %p69 = por %p67, %p68
      %p70 = scmp.ne.s32.totalorder %s59, %s62
      %p71 = scmp.eq.s32.totalorder %s27, 1
      %p72 = por %p70, %p71
      %p73 = scmp.ne.s32.totalorder %s62, %s63
      %p74 = scmp.eq.s32.totalorder %s27, 0
      %p75 = por %p73, %p74
      %p76 = scmp.ne.s32.totalorder %s62, %s63
      %p77 = scmp.eq.s32.totalorder %s28, 1
      %p78 = por %p76, %p77
      %p80 = scmp.ne.s32.totalorder %s63, %s79
      %p81 = scmp.eq.s32.totalorder %s28, 0
      %p82 = por %p80, %p81
      %s83 = sadd.s32 %s30, %s31
      %p84 = scmp.lt.s32.totalorder %s83, 0
      %s85 = scalar_select %p84, %s83, 0
      %s86 = sadd.s32 %s44, %s40
      %p87 = scmp.lt.s32.totalorder %s86, 0
      %s88 = scalar_select %p87, %s86, 0
      %s89 = ssub.s32 %s29, %s48
      %s90 = ssub.s32 %s85, %s88
      %s91 = sor.u32 %s89, %s90
      %p92 = scmp.eq.s32.totalorder %s91, 0
      %s94 = sadd.s32 %s93, 1
      %s95 = scalar_select %p92, %s93, %s94
      %p98 = pneg %p92
      %p99 = scmp.eq.s32.totalorder %s22, 1
      %p100 = por %p98, %p99
      %p101 = scmp.ne.s32.totalorder %s93, %s96
      %p102 = scmp.eq.s32.totalorder %s22, 0
      %p103 = por %p101, %p102
      %p104 = scmp.ne.s32.totalorder %s93, %s96
      %p105 = scmp.eq.s32.totalorder %s27, 1
      %p106 = por %p104, %p105
      %p107 = scmp.ne.s32.totalorder %s96, %s97
      %p108 = scmp.eq.s32.totalorder %s27, 0
      %p109 = por %p107, %p108
      %p110 = scmp.ne.s32.totalorder %s96, %s97
      %p111 = scmp.eq.s32.totalorder %s28, 1
      %p112 = por %p110, %p111
      %p114 = scmp.ne.s32.totalorder %s97, %s113
      %p115 = scmp.eq.s32.totalorder %s28, 0
      %p116 = por %p114, %p115
      %s117 = ssub.s32 %s29, %s48
      %s118 = ssub.s32 %s30, %s44
      %s119 = sor.u32 %s117, %s118
      %p120 = scmp.eq.s32.totalorder %s119, 0
      %s122 = sadd.s32 %s121, 1
      %s123 = scalar_select %p120, %s121, %s122
      %p126 = pneg %p120
      %p127 = scmp.eq.s32.totalorder %s22, 1
      %p128 = por %p126, %p127
      %p129 = scmp.ne.s32.totalorder %s121, %s124
      %p130 = scmp.eq.s32.totalorder %s22, 0
      %p131 = por %p129, %p130
      %p132 = scmp.ne.s32.totalorder %s121, %s124
      %p133 = scmp.eq.s32.totalorder %s27, 1
      %p134 = por %p132, %p133
      %p135 = scmp.ne.s32.totalorder %s124, %s125
      %p136 = scmp.eq.s32.totalorder %s27, 0
      %p137 = por %p135, %p136
      %p138 = scmp.ne.s32.totalorder %s124, %s125
      %p139 = scmp.eq.s32.totalorder %s28, 1
      %p140 = por %p138, %p139
      %p142 = scmp.ne.s32.totalorder %s125, %s141
      %p143 = scmp.eq.s32.totalorder %s28, 0
      %p144 = por %p142, %p143
      %s145 = ssub.s32 %s29, %s48
      %s146 = ssub.s32 %s30, %s44
      %s147 = sor.u32 %s145, %s146
      %p148 = scmp.eq.s32.totalorder %s147, 0
      %s150 = sadd.s32 %s149, 1
      %s151 = scalar_select %p148, %s149, %s150
      %p154 = pneg %p148
      %p155 = scmp.eq.s32.totalorder %s22, 1
      %p156 = por %p154, %p155
      %p157 = scmp.ne.s32.totalorder %s149, %s152
      %p158 = scmp.eq.s32.totalorder %s22, 0
      %p159 = por %p157, %p158
      %p160 = scmp.ne.s32.totalorder %s149, %s152
      %p161 = scmp.eq.s32.totalorder %s27, 1
      %p162 = por %p160, %p161
      %p163 = scmp.ne.s32.totalorder %s152, %s153
      %p164 = scmp.eq.s32.totalorder %s27, 0
      %p165 = por %p163, %p164
      %p166 = scmp.ne.s32.totalorder %s152, %s153
      %p167 = scmp.eq.s32.totalorder %s28, 1
      %p168 = por %p166, %p167
      %p170 = scmp.ne.s32.totalorder %s153, %s169
      %p171 = scmp.eq.s32.totalorder %s28, 0
      %p172 = por %p170, %p171
      %p173 = scmp.le.s32.totalorder 1, %s22
      %p174 = scmp.lt.s32.totalorder %s22, 3
      %p175 = pnand %p173, %p174
      %p176 = pneg %p175
      // Predicated region
      $region9: #{tpu_custom_call.1} parent=5 // pred_check
        _
      $region10: #{tpu_custom_call.1} parent=5 // pred_check_branch
        %178 = sbr.rel (%p175) target = $region12
      $region11: #{tpu_custom_call.1} parent=5 // pred_region
        %s179 = ssub.s32 %s22, 1
      $region12: #{tpu_custom_call.1} parent=5 // pred_fallthru
        _
      %p180 = scmp.lt.s32.totalorder %s22, 2
      // Predicated region
      $region13: #{tpu_custom_call.1} parent=5 // pred_check
        %p181 = pneg %p180
      $region14: #{tpu_custom_call.1} parent=5 // pred_check_branch
        %183 = sbr.rel (%p181) target = $region16
      $region15: #{tpu_custom_call.1} parent=5 // pred_region
        // Predicated region
        $region17: #{tpu_custom_call.1} parent=15 // pred_check
          %p184 = pneg %p69
        $region18: #{tpu_custom_call.1} parent=15 // pred_check_branch
          %186 = sbr.rel (%p184) target = $region20
        $region19: #{tpu_custom_call.1} parent=15 // pred_region
          %s187 = sand.u32 %s59, 1
          %s188 = scalar_lea.sflag [#allocation3], %s187
          %s189 = sand.u32 %s59, 1
          %s190 = smul.addr %s189, 64
          %s191 = scalar_lea.vmem [#allocation2], %s190
          %s192 = sadd.s32 %s30, %s31
          %p193 = scmp.lt.s32.totalorder %s192, 0
          %s194 = scalar_select %p193, %s192, 0
          %s195 = smul.u32 2, %s194
          %s197 = ssub.s32 1024, 1024
          %198 = vsyncadd %s188, %s197
          %s199 = smul.addr %s29, 8
          %s200 = sadd.s32 %s195, %s199
          %s201 = smul.addr %s200, 128
          %s202 = scalar_lea.hbm %s0, %s201
          %s203 = sshll.u32 %s191, 4
          %s204 = int_to_ptr.vmem [resolvable:$true] %s203
          %209 = dma.hbm_to_vmem [thread:$0]  %s202, 1024, %s204, %s188, 128, 128, 8
        $region20: #{tpu_custom_call.1} parent=15 // pred_fallthru
          _
        // Predicated region
        $region21: #{tpu_custom_call.1} parent=15 // pred_check
          %p210 = pneg %p103
        $region22: #{tpu_custom_call.1} parent=15 // pred_check_branch
          %212 = sbr.rel (%p210) target = $region24
        $region23: #{tpu_custom_call.1} parent=15 // pred_region
          %s213 = sand.u32 %s93, 1
          %s214 = scalar_lea.sflag [#allocation6], %s213
          %s215 = sand.u32 %s93, 1
          %s216 = smul.addr %s215, 16
          %s217 = scalar_lea.vmem [#allocation5], %s216
          %s218 = sadd.s32 %s30, %s31
          %p219 = scmp.lt.s32.totalorder %s218, 0
          %s220 = scalar_select %p219, %s218, 0
          %s221 = smul.u32 2, %s220
          %s223 = ssub.s32 256, 256
          %224 = vsyncadd %s214, %s223
          %s225 = smul.addr %s29, 2
          %s226 = sadd.s32 %s221, %s225
          %s227 = smul.addr %s226, 128
          %s228 = scalar_lea.hbm %s1, %s227
          %s229 = sshll.u32 %s217, 4
          %s230 = int_to_ptr.vmem [resolvable:$true] %s229
          %235 = dma.hbm_to_vmem [thread:$0]  %s228, 256, %s230, %s214, 128, 128, 8
        $region24: #{tpu_custom_call.1} parent=15 // pred_fallthru
          _
      $region16: #{tpu_custom_call.1} parent=5 // pred_fallthru
        _
      %p236 = scmp.le.s32.totalorder 1, %s22
      %p237 = scmp.lt.s32.totalorder %s22, 3
      %p238 = pnand %p236, %p237
      %p239 = pneg %p238
      // Predicated region
      $region25: #{tpu_custom_call.1} parent=5 // pred_check
        _
      $region26: #{tpu_custom_call.1} parent=5 // pred_check_branch
        %241 = sbr.rel (%p238) target = $region28
      $region27: #{tpu_custom_call.1} parent=5 // pred_region
        %s242 = ssub.s32 %s22, 1
        %s243 = sand.u32 %s62, 1
        %s244 = scalar_lea.sflag [#allocation3], %s243
        %s245 = sand.u32 %s62, 1
        %s246 = smul.addr %s245, 64
        %s247 = scalar_lea.vmem [#allocation2], %s246
        // Predicated region
        $region29: #{tpu_custom_call.1} parent=27 // pred_check
          %p248 = pneg %p75
        $region30: #{tpu_custom_call.1} parent=27 // pred_check_branch
          %250 = sbr.rel (%p248) target = $region32
        $region31: #{tpu_custom_call.1} parent=27 // pred_region
          %251 = dma.done %s244, 1024
        $region32: #{tpu_custom_call.1} parent=27 // pred_fallthru
          _
        %s252 = sand.u32 %s96, 1
        %s253 = scalar_lea.sflag [#allocation6], %s252
        %s254 = sand.u32 %s96, 1
        %s255 = smul.addr %s254, 16
        %s256 = scalar_lea.vmem [#allocation5], %s255
        // Predicated region
        $region33: #{tpu_custom_call.1} parent=27 // pred_check
          %p257 = pneg %p109
        $region34: #{tpu_custom_call.1} parent=27 // pred_check_branch
          %259 = sbr.rel (%p257) target = $region36
        $region35: #{tpu_custom_call.1} parent=27 // pred_region
          %260 = dma.done %s253, 256
        $region36: #{tpu_custom_call.1} parent=27 // pred_fallthru
          _
        %s261 = sand.u32 %s62, 1
        %s262 = scalar_lea.sflag [#allocation3], %s261
        %s263 = sand.u32 %s62, 1
        %s264 = smul.addr %s263, 64
        %s265 = scalar_lea.vmem [#allocation2], %s264
        %p266 = pneg %p75
        %p267 = pneg %p72
        %s268 = sand.u32 %s96, 1
        %s269 = scalar_lea.sflag [#allocation6], %s268
        %s270 = sand.u32 %s96, 1
        %s271 = smul.addr %s270, 16
        %s272 = scalar_lea.vmem [#allocation5], %s271
        %p273 = pneg %p109
        %p274 = pneg %p106
        %p275 = pneg %p137
        %p276 = pneg %p134
        %s277 = sand.u32 %s124, 1
        %s278 = scalar_lea.sflag [#allocation4], %s277
        %s279 = sand.u32 %s124, 1
        %s280 = smul.addr %s279, 16
        %s281 = scalar_lea.vmem [#allocation7], %s280
        %p282 = pneg %p165
        %p283 = pneg %p162
        %s284 = sand.u32 %s152, 1
        %s285 = scalar_lea.sflag [#allocation9], %s284
        %s286 = sand.u32 %s152, 1
        %s287 = smul.addr %s286, 16
        %s288 = scalar_lea.vmem [#allocation8], %s287
        %s289 = sadd.s32 %s33, %s34
        %p290 = scmp.lt.s32.totalorder %s289, 0
        %s291 = scalar_select %p290, %s289, 0
        %s292 = smul.u32 2, %s291
        %s293 = sadd.s32 %s33, %s34
        %p294 = scmp.lt.s32.totalorder %s293, 0
        %s295 = scalar_select %p294, %s293, 0
        %s296 = smul.u32 2, %s295
        %p297 = scmp.eq.s32.totalorder %s34, 0
        // Predicated region
        $region37: #{tpu_custom_call.1} parent=27 // pred_check
          %p298 = pneg %p297
        $region38: #{tpu_custom_call.1} parent=27 // pred_check_branch
          %300 = sbr.rel (%p298) target = $region40
        $region39: #{tpu_custom_call.1} parent=27 // pred_region
          %301 = vst [vmem:[%s281] sm:$0xff] 0.0
          %302 = vst [vmem:[%s281 + $0x8] sm:$0xff] 0.0
          %303 = vst [vmem:[%s288] sm:$0xff] 0.0
          %304 = vst [vmem:[%s288 + $0x8] sm:$0xff] 0.0
        $region40: #{tpu_custom_call.1} parent=27 // pred_fallthru
          _
        %s305 = sadd.s32 %s33, %s34
        %s306 = smul.u32 %s305, 16
        %v307 = vlaneseq
        %v308 = vshrl.u32 %v307, 7
        %v309 = vadd.s32 %v308, 8
        %v310 = vld [vmem:[%s256] sm:$0xff]
        %v311 = vld [vmem:[%s256 + $0x8] sm:$0xff]
        %s312 = sadd.s32 %s306, 0
        %v313 = vstv %s312
        %v314 = vadd.s32 %v313, %v308
        %v315 = vadd.s32 %v313, %v309
        %vm316 = vcmp.lt.s32.totalorder %v314, 16
        %vm317 = vcmp.lt.s32.totalorder %v315, 16
        %vm318 = vcmp.ne.s32.totalorder %v310, 4294967196
        %vm319 = vcmp.ne.s32.totalorder %v311, 4294967196
        %vm320 = vmand %vm316, %vm318
        %vm321 = vmand %vm317, %vm319
        %v322 = vld [vmem:[%s247] sm:$0xff]
        %v323 = vld [vmem:[%s247 + $0x8] sm:$0xff]
        %s324 = sadd.s32 0, 16
        %s325 = scalar_lea.vmem %s247, %s324 [#allocation2]
        %v326 = vld [vmem:[%s325] sm:$0xff]
        %v327 = vld [vmem:[%s325 + $0x8] sm:$0xff]
        %v328 = vmax.f32 %v322, %v326
        %v329 = vmax.f32 %v323, %v327
        %s330 = sadd.s32 0, 32
        %s331 = scalar_lea.vmem %s247, %s330 [#allocation2]
        %v332 = vld [vmem:[%s331] sm:$0xff]
        %v333 = vld [vmem:[%s331 + $0x8] sm:$0xff]
        %v334 = vmax.f32 %v328, %v332
        %v335 = vmax.f32 %v329, %v333
        %s336 = sadd.s32 0, 48
        %s337 = scalar_lea.vmem %s247, %s336 [#allocation2]
        %v338 = vld [vmem:[%s337] sm:$0xff]
        %v339 = vld [vmem:[%s337 + $0x8] sm:$0xff]
        %v340 = vmax.f32 %v334, %v338
        %v341 = vmax.f32 %v335, %v339
        %v342 = vsub.f32 %v322, %v340
        %v343 = vsub.f32 %v323, %v341
        %v344 = vmul.f32 %v342, 1.442695
        %v345 = vpow.pop %v344
        %v346 = vmul.f32 %v343, 1.442695
        %v347 = vpow.pop %v346
        %v348 = vadd.f32 %v345, 0.0
        %v349 = vadd.f32 %v347, 0.0
        %vm350 = vcmp.eq.s32.totalorder %v310, 0
        %vm351 = vcmp.eq.s32.totalorder %v311, 0
        %v352 = vsel %vm350, %v322, 0.0
        %v353 = vsel %vm351, %v323, 0.0
        %v354 = vadd.f32 %v352, 0.0
        %v355 = vadd.f32 %v353, 0.0
        %v356 = vsub.f32 %v326, %v340
        %v357 = vsub.f32 %v327, %v341
        %v358 = vmul.f32 %v356, 1.442695
        %v359 = vpow.pop %v358
        %v360 = vmul.f32 %v357, 1.442695
        %v361 = vpow.pop %v360
        %v362 = vadd.f32 %v348, %v359
        %v363 = vadd.f32 %v349, %v361
        %vm364 = vcmp.eq.s32.totalorder %v310, 1
        %vm365 = vcmp.eq.s32.totalorder %v311, 1
        %v366 = vsel %vm364, %v326, 0.0
        %v367 = vsel %vm365, %v327, 0.0
        %v368 = vadd.f32 %v354, %v366
        %v369 = vadd.f32 %v355, %v367
        %v370 = vsub.f32 %v332, %v340
        %v371 = vsub.f32 %v333, %v341
        %v372 = vmul.f32 %v370, 1.442695
        %v373 = vpow.pop %v372
        %v374 = vmul.f32 %v371, 1.442695
        %v375 = vpow.pop %v374
        %v376 = vadd.f32 %v362, %v373
        %v377 = vadd.f32 %v363, %v375
        %vm378 = vcmp.eq.s32.totalorder %v310, 2
        %vm379 = vcmp.eq.s32.totalorder %v311, 2
        %v380 = vsel %vm378, %v332, 0.0
        %v381 = vsel %vm379, %v333, 0.0
        %v382 = vadd.f32 %v368, %v380
        %v383 = vadd.f32 %v369, %v381
        %v384 = vsub.f32 %v338, %v340
        %v385 = vsub.f32 %v339, %v341
        %v386 = vmul.f32 %v384, 1.442695
        %v387 = vpow.pop %v386
        %v388 = vmul.f32 %v385, 1.442695
        %v389 = vpow.pop %v388
        %v390 = vadd.f32 %v376, %v387
        %v391 = vadd.f32 %v377, %v389
        %vm392 = vcmp.eq.s32.totalorder %v310, 3
        %vm393 = vcmp.eq.s32.totalorder %v311, 3
        %v394 = vsel %vm392, %v338, 0.0
        %v395 = vsel %vm393, %v339, 0.0
        %v396 = vadd.f32 %v382, %v394
        %v397 = vadd.f32 %v383, %v395
        %v398 = vlog2.pop %v390
        %v399 = vmul.f32 %v398, 0.6931472
        %v400 = vlog2.pop %v391
        %v401 = vmul.f32 %v400, 0.6931472
        %v402 = vadd.f32 %v340, %v399
        %v403 = vadd.f32 %v341, %v401
        %v404 = vsub.f32 %v402, %v396
        %v405 = vsub.f32 %v403, %v397
        %v406 = vsel %vm320, %v404, 0.0
        %v407 = vsel %vm321, %v405, 0.0
        %v408 = vadd.f32 %v406, 0.0
        %v409 = vadd.f32 %v407, 0.0
        %v410 = vsel %vm320, 1, 0
        %v411 = vsel %vm321, 1, 0
        %v412 = vcvt.s32.f32 %v410
        %v413 = vcvt.s32.f32 %v411
        %v414 = vadd.f32 %v412, 0.0
        %v415 = vadd.f32 %v413, 0.0
        %v416 = vld [vmem:[%s281] sm:$0xff]
        %v417 = vld [vmem:[%s281 + $0x8] sm:$0xff]
        %v418 = vadd.f32 %v416, %v408
        %v419 = vadd.f32 %v417, %v409
        %420 = vst [vmem:[%s281] sm:$0xff] %v418
        %421 = vst [vmem:[%s281 + $0x8] sm:$0xff] %v419
        %v422 = vld [vmem:[%s288] sm:$0xff]
        %v423 = vld [vmem:[%s288 + $0x8] sm:$0xff]
        %v424 = vadd.f32 %v422, %v414
        %v425 = vadd.f32 %v423, %v415
        %426 = vst [vmem:[%s288] sm:$0xff] %v424
        %427 = vst [vmem:[%s288 + $0x8] sm:$0xff] %v425
        %s428 = sand.u32 %s124, 1
        %s429 = scalar_lea.sflag [#allocation4], %s428
        %s430 = sand.u32 %s124, 1
        %s431 = smul.addr %s430, 16
        %s432 = scalar_lea.vmem [#allocation7], %s431
        %s433 = sand.u32 %s152, 1
        %s434 = scalar_lea.sflag [#allocation9], %s433
        %s435 = sand.u32 %s152, 1
        %s436 = smul.addr %s435, 16
        %s437 = scalar_lea.vmem [#allocation8], %s436
        // Predicated region
        $region41: #{tpu_custom_call.1} parent=27 // pred_check
          %p438 = pneg %p134
        $region42: #{tpu_custom_call.1} parent=27 // pred_check_branch
          %440 = sbr.rel (%p438) target = $region44
        $region43: #{tpu_custom_call.1} parent=27 // pred_region
          %s442 = ssub.s32 256, 256
          %443 = vsyncadd %s429, %s442
          %s444 = smul.addr %s33, 2
          %s445 = smul.addr %s32, 2
          %s446 = sadd.s32 %s444, %s445
          %s447 = smul.addr %s446, 128
          %s448 = scalar_lea.hbm %s2, %s447
          %s449 = sshll.u32 %s432, 4
          %s450 = int_to_ptr.vmem [resolvable:$true] %s449
          %455 = dma.vmem_to_hbm [thread:$0]  %s450, 256, %s448, %s429, 128, 128, 8
        $region44: #{tpu_custom_call.1} parent=27 // pred_fallthru
          _
        // Predicated region
        $region45: #{tpu_custom_call.1} parent=27 // pred_check
          %p456 = pneg %p162
        $region46: #{tpu_custom_call.1} parent=27 // pred_check_branch
          %458 = sbr.rel (%p456) target = $region48
        $region47: #{tpu_custom_call.1} parent=27 // pred_region
          %s460 = ssub.s32 256, 256
          %461 = vsyncadd %s434, %s460
          %s462 = smul.addr %s33, 2
          %s463 = smul.addr %s32, 2
          %s464 = sadd.s32 %s462, %s463
          %s465 = smul.addr %s464, 128
          %s466 = scalar_lea.hbm %s3, %s465
          %s467 = sshll.u32 %s437, 4
          %s468 = int_to_ptr.vmem [resolvable:$true] %s467
          %473 = dma.vmem_to_hbm [thread:$0]  %s468, 256, %s466, %s434, 128, 128, 8
        $region48: #{tpu_custom_call.1} parent=27 // pred_fallthru
          _
      $region28: #{tpu_custom_call.1} parent=5 // pred_fallthru
        _
      %p474 = scmp.le.s32.totalorder 2, %s22
      // Predicated region
      $region49: #{tpu_custom_call.1} parent=5 // pred_check
        %p475 = pneg %p474
      $region50: #{tpu_custom_call.1} parent=5 // pred_check_branch
        %477 = sbr.rel (%p475) target = $region52
      $region51: #{tpu_custom_call.1} parent=5 // pred_region
        %s478 = ssub.s32 %s22, 2
        // Predicated region
        $region53: #{tpu_custom_call.1} parent=51 // pred_check
          %p479 = pneg %p140
        $region54: #{tpu_custom_call.1} parent=51 // pred_check_branch
          %481 = sbr.rel (%p479) target = $region56
        $region55: #{tpu_custom_call.1} parent=51 // pred_region
          %s482 = sand.u32 %s125, 1
          %s483 = scalar_lea.sflag [#allocation4], %s482
          %s484 = sand.u32 %s125, 1
          %s485 = smul.addr %s484, 16
          %s486 = scalar_lea.vmem [#allocation7], %s485
          %487 = dma.done %s483, 256
        $region56: #{tpu_custom_call.1} parent=51 // pred_fallthru
          _
        // Predicated region
        $region57: #{tpu_custom_call.1} parent=51 // pred_check
          %p488 = pneg %p168
        $region58: #{tpu_custom_call.1} parent=51 // pred_check_branch
          %490 = sbr.rel (%p488) target = $region60
        $region59: #{tpu_custom_call.1} parent=51 // pred_region
          %s491 = sand.u32 %s153, 1
          %s492 = scalar_lea.sflag [#allocation9], %s491
          %s493 = sand.u32 %s153, 1
          %s494 = smul.addr %s493, 16
          %s495 = scalar_lea.vmem [#allocation8], %s494
          %496 = dma.done %s492, 256
        $region60: #{tpu_custom_call.1} parent=51 // pred_fallthru
          _
      $region52: #{tpu_custom_call.1} parent=5 // pred_fallthru
        _
    $region6: #{tpu_custom_call.1} parent=1 // loop_footer
      %s26 = sadd.s32 1, %s22
    $region7: #{tpu_custom_call.1} parent=1 // loop_footer_branch
      %21 = sbr.rel target = $region3
    $region8: #{tpu_custom_call.1} parent=1 // loop_exit
      _
    %497 = vsyncpa [#allocation3], 1
    %s498 = scalar_lea.sflag [#allocation3], 1
    %499 = vsyncpa %s498, 1
    %500 = vsyncpa [#allocation6], 1
    %s501 = scalar_lea.sflag [#allocation6], 1
    %502 = vsyncpa %s501, 1
    %503 = vsyncpa [#allocation4], 1
    %s504 = scalar_lea.sflag [#allocation4], 1
    %505 = vsyncpa %s504, 1
    %506 = vsyncpa [#allocation9], 1
    %s507 = scalar_lea.sflag [#allocation9], 1
    %508 = vsyncpa %s507, 1

</llo_original>
